<compile_context>
chip_gen: v7x
topology: tpu7x:2x2x1
jax: 0.10.0
libtpu: 0.0.40
codegen_flags: <defaults>
</compile_context>

<pallas_src>
import functools

import jax
import jax.numpy as jnp
from jax.experimental import pallas as pl
from jax.experimental.pallas import tpu as pltpu

_LANES = 128


def _hw_config():
    """Best-effort TPU generation detection. Never raises.

    Returns (tensorcores_per_chip, max_block_slabs).
    """
    cores = 1
    max_block_slabs = 256          # 1 MiB f32 blocks: safe default (v5e/unknown)
    kind = ""
    try:
        kind = jax.devices()[0].device_kind.lower()
    except Exception:
        pass
    # TensorCores per chip: try the trace-time hardware query first, then fall
    # back to device_kind parsing (v4/v5p megacore and v7x expose 2 TCs/chip).
    try:
        info = pltpu.get_tpu_info()
        for attr in ("num_tensorcores", "tensorcore_count", "num_cores",
                     "core_count"):
            v = getattr(info, attr, None)
            if isinstance(v, int) and v > 0:
                cores = v
                break
    except Exception:
        pass
    if cores == 1 and any(s in kind for s in ("v4", "v5p", "v7", "7x")):
        cores = 2
    # Block size per generation:
    #   v5e (~820 GB/s HBM): 256-slab (1 MiB) blocks already ~87% of roofline
    #     and stay well inside the 16 MiB default scoped VMEM.
    #   v6e/v7x (1.3-3.2 TB/s): 512-slab (2 MiB) blocks amortize the ~0.35 us
    #     fixed per-grid-step cost (4 inputs x 2 buffers x 2 MiB = 16 MiB VMEM).
    if any(s in kind for s in ("v6", "v7", "7x")):
        max_block_slabs = 512
    return cores, max_block_slabs


def _sse_kernel(num_pairs, blocks_total, steps, need_guard, *refs):
    """Accumulate per-pair sum((p - t)^2) into per-core (sublanes,128) partials.

    refs = (p_0, t_0, p_1, t_1, ..., out_ref)
      input blocks : (block_slabs, sublanes, 128)
      out_ref      : (1, num_pairs, sublanes, 128), resident across grid axis 1.
    """
    out_ref = refs[-1]
    in_refs = refs[:-1]
    step = pl.program_id(1)

    @pl.when(step == 0)
    def _():
        out_ref[...] = jnp.zeros_like(out_ref)

    def accumulate():
        for i in range(num_pairs):
            p = in_refs[2 * i][...].astype(jnp.float32)
            t = in_refs[2 * i + 1][...].astype(jnp.float32)
            d = p - t
            # (block_slabs, sublanes, 128) -> (sublanes, 128): vreg-wise VPU
            # adds only; no cross-lane work inside the hot loop.
            out_ref[0, i] += jnp.sum(d * d, axis=0)

    if need_guard:
        # Uneven split of blocks across cores: the overflow step re-reads a
        # clamped (valid) block but must not accumulate it twice.
        block_idx = pl.program_id(0) * steps + step

        @pl.when(block_idx < blocks_total)
        def _():
            accumulate()
    else:
        accumulate()


def _pallas_sse(mains, num_pairs, ncores, steps, block_slabs, blocks_total,
                sublanes, itemsize):
    need_guard = (ncores * steps) != blocks_total

    def in_map(c, i):
        b = c * steps + i
        if need_guard:
            b = jnp.minimum(b, blocks_total - 1)   # keep every DMA in-bounds
        return (b, 0, 0)

    in_spec = pl.BlockSpec((block_slabs, sublanes, _LANES), in_map)
    out_spec = pl.BlockSpec((1, num_pairs, sublanes, _LANES),
                            lambda c, i: (c, 0, 0, 0))

    n_inputs = 2 * num_pairs
    block_bytes = block_slabs * sublanes * _LANES * itemsize
    acc_bytes = ncores * num_pairs * sublanes * _LANES * 4
    # 4 inputs x 2 pipeline buffers + resident accumulator + generous margin.
    vmem_limit = max(32 * 1024 * 1024,
                     n_inputs * 2 * block_bytes + 2 * acc_bytes + (8 << 20))

    n_main_elems = blocks_total * block_slabs * sublanes * _LANES
    cost = pl.CostEstimate(
        flops=3 * n_main_elems * num_pairs,
        transcendentals=0,
        bytes_accessed=n_inputs * n_main_elems * itemsize + acc_bytes,
    )

    partials = pl.pallas_call(
        functools.partial(_sse_kernel, num_pairs, blocks_total, steps,
                          need_guard),
        out_shape=jax.ShapeDtypeStruct(
            (ncores, num_pairs, sublanes, _LANES), jnp.float32),
        grid_spec=pltpu.PrefetchScalarGridSpec(
            num_scalar_prefetch=0,
            grid=(ncores, steps),
            in_specs=[in_spec] * n_inputs,
            out_specs=out_spec,
        ),
        compiler_params=pltpu.CompilerParams(
            dimension_semantics=("parallel", "arbitrary"),
            vmem_limit_bytes=int(vmem_limit),
        ),
        cost_estimate=cost,
    )(*mains)
    # (ncores, num_pairs, sublanes, 128) -> (num_pairs,): done once, outside.
    return jnp.sum(partials, axis=(0, 2, 3))


def _sse_pairs(pairs):
    """Per-pair sum((pred - target)^2), returned as an f32 vector.

    All pairs must share one element count and dtype (they share a fused call).
    """
    num_pairs = len(pairs)
    n = pairs[0][0].size
    itemsize = jnp.dtype(pairs[0][0].dtype).itemsize
    # Pack sub-32-bit dtypes densely along sublanes: f32 -> 8, bf16 -> 16,
    # int8/fp8 -> 32 rows per 128-lane slab (kernel upcasts to f32).
    sublanes = 8 * max(1, 4 // itemsize)
    slab = sublanes * _LANES

    flats = [(jnp.ravel(p), jnp.ravel(t)) for p, t in pairs]

    slabs = n // slab
    if slabs == 0:
        # Smaller than one slab: everything is "tail".
        n_main = 0
        main_sse = jnp.zeros((num_pairs,), jnp.float32)
    else:
        ncores, max_block_slabs = _hw_config()
        block_slabs = min(max_block_slabs, slabs)
        blocks_total = slabs // block_slabs          # full blocks only
        ncores = min(ncores, blocks_total)
        steps = pl.cdiv(blocks_total, ncores)
        main_slabs = blocks_total * block_slabs
        n_main = main_slabs * slab

        mains = []
        for p, t in flats:
            for a in (p, t):
                if n == slabs * slab:
                    # Zero-copy: reshaping the FULL buffer is a bitcast; the
                    # grid simply never visits the (< one block of) slab rows
                    # past main_slabs — those are folded into the JAX tail.
                    mains.append(a.reshape(slabs, sublanes, _LANES))
                else:
                    # Ragged element count: XLA materializes this prefix slice
                    # before the custom call (~2N extra HBM traffic).
                    # TODO(synk): a fully copy-free ragged path needs 1-D
                    # blocks + in-kernel masking; kept off the default path
                    # for lowering robustness.
                    mains.append(
                        a[:n_main].reshape(main_slabs, sublanes, _LANES))
        main_sse = _pallas_sse(mains, num_pairs, ncores, steps, block_slabs,
                               blocks_total, sublanes, itemsize)

    # Tail past the last full block (< one block + one slab): tiny, fused
    # plain-JAX reduction; the big tensors never get a padded/zeroed copy.
    tails = []
    for p, t in flats:
        d = p[n_main:].astype(jnp.float32) - t[n_main:].astype(jnp.float32)
        tails.append(jnp.sum(d * d))
    return main_sse + jnp.stack(tails)


@jax.jit
def mse_loss(pred_force, target_force, pred_torque, target_torque):
    """Equivalent of MSELoss.forward: MSE(force) + MSE(torque)."""
    n_f = pred_force.size
    n_t = pred_torque.size
    if n_f == n_t and pred_force.dtype == pred_torque.dtype:
        sse = _sse_pairs(
            [(pred_force, target_force), (pred_torque, target_torque)]
        )
        sse_f, sse_t = sse[0], sse[1]
    else:
        sse_f = _sse_pairs([(pred_force, target_force)])[0]
        sse_t = _sse_pairs([(pred_torque, target_torque)])[0]
    return sse_f / jnp.float32(n_f) + sse_t / jnp.float32(n_t)


if __name__ == "__main__":
    key = jax.random.PRNGKey(0)
    k1, k2, k3, k4 = jax.random.split(key, 4)

    # batch=2, particles=2048, 3 force/torque components -> 12288 elements:
    # slab-divisible, so the fused Pallas path consumes the full buffers via
    # zero-copy reshapes (no prefix-slice materialization).
    shape = (2, 2048, 3)
    pred_force = jax.random.normal(k1, shape, dtype=jnp.float32)
    target_force = jax.random.normal(k2, shape, dtype=jnp.float32)
    pred_torque = jax.random.normal(k3, shape, dtype=jnp.float32)
    target_torque = jax.random.normal(k4, shape, dtype=jnp.float32)

    loss = mse_loss(pred_force, target_force, pred_torque, target_torque)
    jax.block_until_ready(loss)
    ref = jnp.mean((pred_force - target_force) ** 2) + jnp.mean(
        (pred_torque - target_torque) ** 2
    )
    assert jnp.allclose(loss, ref, rtol=1e-5, atol=1e-6), (loss, ref)

    # Ragged size (not slab-divisible): Pallas main blocks + small JAX tail.
    r1, r2, r3, r4 = jax.random.split(jax.random.PRNGKey(1), 4)
    shape_r = (2, 2050, 3)
    args_r = [jax.random.normal(k, shape_r, dtype=jnp.float32)
              for k in (r1, r2, r3, r4)]
    loss_r = mse_loss(*args_r)
    jax.block_until_ready(loss_r)
    ref_r = jnp.mean((args_r[0] - args_r[1]) ** 2) + jnp.mean(
        (args_r[2] - args_r[3]) ** 2
    )
    assert jnp.allclose(loss_r, ref_r, rtol=1e-5, atol=1e-6), (loss_r, ref_r)

    # Tiny input: everything below one slab goes through the plain-JAX tail.
    s1, s2, s3, s4 = jax.random.split(jax.random.PRNGKey(2), 4)
    shape_s = (2, 16, 3)
    args_s = [jax.random.normal(k, shape_s, dtype=jnp.float32)
              for k in (s1, s2, s3, s4)]
    loss_s = mse_loss(*args_s)
    jax.block_until_ready(loss_s)
    ref_s = jnp.mean((args_s[0] - args_s[1]) ** 2) + jnp.mean(
        (args_s[2] - args_s[3]) ** 2
    )
    assert jnp.allclose(loss_s, ref_s, rtol=1e-5, atol=1e-6), (loss_s, ref_s)

    print("KERNEL_OK")
</pallas_src>

<mosaic_0001>
module attributes {stable_mosaic.version = 11 : i64} {
  func.func @_sse_kernel(%arg0: i32, %arg1: i32, %arg2: memref<12x8x128xf32, #tpu.memory_space<vmem>>, %arg3: memref<12x8x128xf32, #tpu.memory_space<vmem>>, %arg4: memref<12x8x128xf32, #tpu.memory_space<vmem>>, %arg5: memref<12x8x128xf32, #tpu.memory_space<vmem>>, %arg6: memref<1x2x8x128xf32, #tpu.memory_space<vmem>>) attributes {dimension_semantics = [#tpu.dimension_semantics<parallel>, #tpu.dimension_semantics<arbitrary>], iteration_bounds = array<i64: 1, 1>, scalar_prefetch = 0 : i64, scratch_operands = 0 : i64, tpu.core_type = #tpu.core_type<tc>, window_params = [{transform_indices = @transform_0, window_bounds = array<i64: 12, 8, 128>}, {transform_indices = @transform_1, window_bounds = array<i64: 12, 8, 128>}, {transform_indices = @transform_2, window_bounds = array<i64: 12, 8, 128>}, {transform_indices = @transform_3, window_bounds = array<i64: 12, 8, 128>}, {transform_indices = @transform_4, window_bounds = array<i64: 1, 2, 8, 128>}]} {
    %c0_i32 = arith.constant 0 : i32
    %0 = arith.cmpi eq, %arg1, %c0_i32 : i32
    %1 = arith.extui %0 : i1 to i32
    %c0_i32_0 = arith.constant 0 : i32
    %2 = arith.cmpi ne, %1, %c0_i32_0 : i32
    scf.if %2 {
      %cst_28 = arith.constant 0.000000e+00 : f32
      %25 = vector.broadcast %cst_28 : f32 to vector<1x2x8x128xf32>
      %c0_29 = arith.constant 0 : index
      %c0_30 = arith.constant 0 : index
      %c0_31 = arith.constant 0 : index
      %c0_32 = arith.constant 0 : index
      %26 = vector.load %arg6[%c0_29, %c0_30, %c0_31, %c0_32] : memref<1x2x8x128xf32, #tpu.memory_space<vmem>>, vector<1x2x8x128xf32>
      tpu.vector_store %arg6[%c0_29, %c0_30, %c0_31, %c0_32], %25 {strides = array<i32>} : memref<1x2x8x128xf32, #tpu.memory_space<vmem>>, vector<1x2x8x128xf32>,
    } else {
    }
    %c0 = arith.constant 0 : index
    %c0_1 = arith.constant 0 : index
    %c0_2 = arith.constant 0 : index
    %3 = vector.load %arg2[%c0, %c0_1, %c0_2] : memref<12x8x128xf32, #tpu.memory_space<vmem>>, vector<12x8x128xf32>
    %c0_3 = arith.constant 0 : index
    %c0_4 = arith.constant 0 : index
    %c0_5 = arith.constant 0 : index
    %4 = vector.load %arg3[%c0_3, %c0_4, %c0_5] : memref<12x8x128xf32, #tpu.memory_space<vmem>>, vector<12x8x128xf32>
    %5 = arith.subf %3, %4 : vector<12x8x128xf32>
    %c0_6 = arith.constant 0 : index
    %c0_7 = arith.constant 0 : index
    %c0_8 = arith.constant 0 : index
    %c0_9 = arith.constant 0 : index
    %6 = vector.load %arg6[%c0_6, %c0_7, %c0_8, %c0_9] : memref<1x2x8x128xf32, #tpu.memory_space<vmem>>, vector<1x1x8x128xf32>
    %7 = vector.shape_cast %6 : vector<1x1x8x128xf32> to vector<8x128xf32>
    %8 = arith.mulf %5, %5 : vector<12x8x128xf32>
    %cst = arith.constant dense<0.000000e+00> : vector<8x128xf32>
    %9 = vector.multi_reduction <add>, %8, %cst [0] : vector<12x8x128xf32> to vector<8x128xf32>
    %10 = arith.addf %7, %9 : vector<8x128xf32>
    %c0_10 = arith.constant 0 : index
    %c0_11 = arith.constant 0 : index
    %c0_12 = arith.constant 0 : index
    %c0_13 = arith.constant 0 : index
    %11 = vector.load %arg6[%c0_10, %c0_11, %c0_12, %c0_13] : memref<1x2x8x128xf32, #tpu.memory_space<vmem>>, vector<1x1x8x128xf32>
    %12 = vector.shape_cast %11 : vector<1x1x8x128xf32> to vector<8x128xf32>
    %13 = vector.shape_cast %10 : vector<8x128xf32> to vector<1x1x8x128xf32>
    tpu.vector_store %arg6[%c0_10, %c0_11, %c0_12, %c0_13], %13 {strides = array<i32>} : memref<1x2x8x128xf32, #tpu.memory_space<vmem>>, vector<1x1x8x128xf32>,
    %c0_14 = arith.constant 0 : index
    %c0_15 = arith.constant 0 : index
    %c0_16 = arith.constant 0 : index
    %14 = vector.load %arg4[%c0_14, %c0_15, %c0_16] : memref<12x8x128xf32, #tpu.memory_space<vmem>>, vector<12x8x128xf32>
    %c0_17 = arith.constant 0 : index
    %c0_18 = arith.constant 0 : index
    %c0_19 = arith.constant 0 : index
    %15 = vector.load %arg5[%c0_17, %c0_18, %c0_19] : memref<12x8x128xf32, #tpu.memory_space<vmem>>, vector<12x8x128xf32>
    %16 = arith.subf %14, %15 : vector<12x8x128xf32>
    %c0_20 = arith.constant 0 : index
    %c1 = arith.constant 1 : index
    %c0_21 = arith.constant 0 : index
    %c0_22 = arith.constant 0 : index
    %17 = vector.load %arg6[%c0_20, %c1, %c0_21, %c0_22] : memref<1x2x8x128xf32, #tpu.memory_space<vmem>>, vector<1x1x8x128xf32>
    %18 = vector.shape_cast %17 : vector<1x1x8x128xf32> to vector<8x128xf32>
    %19 = arith.mulf %16, %16 : vector<12x8x128xf32>
    %cst_23 = arith.constant dense<0.000000e+00> : vector<8x128xf32>
    %20 = vector.multi_reduction <add>, %19, %cst_23 [0] : vector<12x8x128xf32> to vector<8x128xf32>
    %21 = arith.addf %18, %20 : vector<8x128xf32>
    %c0_24 = arith.constant 0 : index
    %c1_25 = arith.constant 1 : index
    %c0_26 = arith.constant 0 : index
    %c0_27 = arith.constant 0 : index
    %22 = vector.load %arg6[%c0_24, %c1_25, %c0_26, %c0_27] : memref<1x2x8x128xf32, #tpu.memory_space<vmem>>, vector<1x1x8x128xf32>
    %23 = vector.shape_cast %22 : vector<1x1x8x128xf32> to vector<8x128xf32>
    %24 = vector.shape_cast %21 : vector<8x128xf32> to vector<1x1x8x128xf32>
    tpu.vector_store %arg6[%c0_24, %c1_25, %c0_26, %c0_27], %24 {strides = array<i32>} : memref<1x2x8x128xf32, #tpu.memory_space<vmem>>, vector<1x1x8x128xf32>,
    return
  }
  func.func @transform_0(%arg0: i32, %arg1: i32) -> (i32, i32, i32) {
    %c1_i32 = arith.constant 1 : i32
    %0 = arith.muli %arg0, %c1_i32 : i32
    %1 = arith.addi %0, %arg1 : i32
    %c0_i32 = arith.constant 0 : i32
    %c0_i32_0 = arith.constant 0 : i32
    %c0_i32_1 = arith.constant 0 : i32
    return %1, %c0_i32, %c0_i32_0 : i32, i32, i32
  }
  func.func @transform_1(%arg0: i32, %arg1: i32) -> (i32, i32, i32) {
    %c1_i32 = arith.constant 1 : i32
    %0 = arith.muli %arg0, %c1_i32 : i32
    %1 = arith.addi %0, %arg1 : i32
    %c0_i32 = arith.constant 0 : i32
    %c0_i32_0 = arith.constant 0 : i32
    %c0_i32_1 = arith.constant 0 : i32
    return %1, %c0_i32, %c0_i32_0 : i32, i32, i32
  }
  func.func @transform_2(%arg0: i32, %arg1: i32) -> (i32, i32, i32) {
    %c1_i32 = arith.constant 1 : i32
    %0 = arith.muli %arg0, %c1_i32 : i32
    %1 = arith.addi %0, %arg1 : i32
    %c0_i32 = arith.constant 0 : i32
    %c0_i32_0 = arith.constant 0 : i32
    %c0_i32_1 = arith.constant 0 : i32
    return %1, %c0_i32, %c0_i32_0 : i32, i32, i32
  }
  func.func @transform_3(%arg0: i32, %arg1: i32) -> (i32, i32, i32) {
    %c1_i32 = arith.constant 1 : i32
    %0 = arith.muli %arg0, %c1_i32 : i32
    %1 = arith.addi %0, %arg1 : i32
    %c0_i32 = arith.constant 0 : i32
    %c0_i32_0 = arith.constant 0 : i32
    %c0_i32_1 = arith.constant 0 : i32
    return %1, %c0_i32, %c0_i32_0 : i32, i32, i32
  }
  func.func @transform_4(%arg0: i32, %arg1: i32) -> (i32, i32, i32, i32) {
    %c0_i32 = arith.constant 0 : i32
    %c0_i32_0 = arith.constant 0 : i32
    %c0_i32_1 = arith.constant 0 : i32
    %c0_i32_2 = arith.constant 0 : i32
    return %arg0, %c0_i32, %c0_i32_0, %c0_i32_1 : i32, i32, i32, i32
  }
}

</mosaic_0001>

<llo_original>
// kernel: mse_loss.1
$region0: #{mse_loss.1}
  #allocation0 [shape = 'u32[]', space=smem, size = 0x4, offset = 0x4, fixed_abs, tag = 'smem constant byte address 0x4 - core index']
  #allocation1 [shape = 'u32[144,128]{1,0:T(1,128)}', space=vmem, size = 0x12000, scoped, tag = 'internal scratch']
  %s0 = inlined_call_operand.vmem [shape: f32[12,8,128], index: 0, kind: input, shape index: {}]
  %s1 = inlined_call_operand.vmem [shape: f32[12,8,128], index: 1, kind: input, shape index: {}]
  %s2 = inlined_call_operand.vmem [shape: f32[12,8,128], index: 2, kind: input, shape index: {}]
  %s3 = inlined_call_operand.vmem [shape: f32[12,8,128], index: 3, kind: input, shape index: {}]
  %s4 = inlined_call_operand.vmem [shape: f32[1,2,8,128], index: 4, kind: output, shape index: {}]
  %s5 = sld [smem:[#allocation0]]
  $region30: #{mse_loss.1} parent=0
    _
  %s7 = ssub.s32 1, %s5
  %s8 = scalar_select 0, %s7, %s5
  // Predicated region
  $region2: #{mse_loss.1} parent=0 // pred_check
    _
  $region3: #{mse_loss.1} parent=0 // pred_check_branch
    %10 = sbr.rel (0) target = $region5
  $region4: #{mse_loss.1} parent=0 // pred_region
    %s11 = sadd.s32 0, 0
    %s12 = smul.u32 12, %s11
    %p13 = scmp.lt.s32.totalorder %s12, 11
    %s14 = scalar_select %p13, %s12, 11
    %s15 = smul.addr %s14, 8
    %s16 = scalar_lea.vmem %s0, %s15
    %s17 = sadd.s32 0, 0
    %s18 = smul.u32 12, %s17
  $region5: #{mse_loss.1} parent=0 // pred_fallthru
    _
  // Predicated region
  $region6: #{mse_loss.1} parent=0 // pred_check
    _
  $region7: #{mse_loss.1} parent=0 // pred_check_branch
    %20 = sbr.rel (0) target = $region9
  $region8: #{mse_loss.1} parent=0 // pred_region
    %s21 = sadd.s32 0, 0
    %s22 = smul.u32 12, %s21
    %p23 = scmp.lt.s32.totalorder %s22, 11
    %s24 = scalar_select %p23, %s22, 11
    %s25 = smul.addr %s24, 8
    %s26 = scalar_lea.vmem %s1, %s25
    %s27 = sadd.s32 0, 0
    %s28 = smul.u32 12, %s27
  $region9: #{mse_loss.1} parent=0 // pred_fallthru
    _
  // Predicated region
  $region10: #{mse_loss.1} parent=0 // pred_check
    _
  $region11: #{mse_loss.1} parent=0 // pred_check_branch
    %30 = sbr.rel (0) target = $region13
  $region12: #{mse_loss.1} parent=0 // pred_region
    %s31 = sadd.s32 0, 0
    %s32 = smul.u32 12, %s31
    %p33 = scmp.lt.s32.totalorder %s32, 11
    %s34 = scalar_select %p33, %s32, 11
    %s35 = smul.addr %s34, 8
    %s36 = scalar_lea.vmem %s2, %s35
    %s37 = sadd.s32 0, 0
    %s38 = smul.u32 12, %s37
  $region13: #{mse_loss.1} parent=0 // pred_fallthru
    _
  // Predicated region
  $region14: #{mse_loss.1} parent=0 // pred_check
    _
  $region15: #{mse_loss.1} parent=0 // pred_check_branch
    %40 = sbr.rel (0) target = $region17
  $region16: #{mse_loss.1} parent=0 // pred_region
    %s41 = sadd.s32 0, 0
    %s42 = smul.u32 12, %s41
    %p43 = scmp.lt.s32.totalorder %s42, 11
    %s44 = scalar_select %p43, %s42, 11
    %s45 = smul.addr %s44, 8
    %s46 = scalar_lea.vmem %s3, %s45
    %s47 = sadd.s32 0, 0
    %s48 = smul.u32 12, %s47
  $region17: #{mse_loss.1} parent=0 // pred_fallthru
    _
  %s49 = sadd.s32 0, 0
  %s50 = smul.u32 12, %s49
  %p51 = scmp.lt.s32.totalorder %s50, 11
  %s52 = scalar_select %p51, %s50, 11
  %s53 = smul.addr %s52, 8
  %s54 = scalar_lea.vmem %s0, %s53
  %s55 = sadd.s32 0, 0
  %s56 = smul.u32 12, %s55
  %p57 = scmp.lt.s32.totalorder %s56, 11
  %s58 = scalar_select %p57, %s56, 11
  %s59 = smul.addr %s58, 8
  %s60 = scalar_lea.vmem %s1, %s59
  %s61 = sadd.s32 0, 0
  %s62 = smul.u32 12, %s61
  %p63 = scmp.lt.s32.totalorder %s62, 11
  %s64 = scalar_select %p63, %s62, 11
  %s65 = smul.addr %s64, 8
  %s66 = scalar_lea.vmem %s2, %s65
  %s67 = sadd.s32 0, 0
  %s68 = smul.u32 12, %s67
  %p69 = scmp.lt.s32.totalorder %s68, 11
  %s70 = scalar_select %p69, %s68, 11
  %s71 = smul.addr %s70, 8
  %s72 = scalar_lea.vmem %s3, %s71
  %s73 = sadd.s32 0, 0
  %s74 = smul.u32 12, %s73
  %p75 = scmp.lt.s32.totalorder %s74, 11
  %s76 = scalar_select %p75, %s74, 11
  %s77 = smul.addr %s76, 8
  %s78 = scalar_lea.vmem %s0, %s77
  %s79 = sadd.s32 0, 0
  %s80 = smul.u32 12, %s79
  %s81 = sadd.s32 0, 0
  %s82 = smul.u32 12, %s81
  %p83 = scmp.lt.s32.totalorder %s82, 11
  %s84 = scalar_select %p83, %s82, 11
  %s85 = smul.addr %s84, 8
  %s86 = scalar_lea.vmem %s1, %s85
  %s87 = sadd.s32 0, 0
  %s88 = smul.u32 12, %s87
  %s89 = sadd.s32 0, 0
  %s90 = smul.u32 12, %s89
  %p91 = scmp.lt.s32.totalorder %s90, 11
  %s92 = scalar_select %p91, %s90, 11
  %s93 = smul.addr %s92, 8
  %s94 = scalar_lea.vmem %s2, %s93
  %s95 = sadd.s32 0, 0
  %s96 = smul.u32 12, %s95
  %s97 = sadd.s32 0, 0
  %s98 = smul.u32 12, %s97
  %p99 = scmp.lt.s32.totalorder %s98, 11
  %s100 = scalar_select %p99, %s98, 11
  %s101 = smul.addr %s100, 8
  %s102 = scalar_lea.vmem %s3, %s101
  %s103 = sadd.s32 0, 0
  %s104 = smul.u32 12, %s103
  %p105 = scmp.eq.s32.totalorder 0, 0
  // Predicated region
  $region18: #{mse_loss.1} parent=0 // pred_check
    %p106 = pneg %p105
  $region19: #{mse_loss.1} parent=0 // pred_check_branch
    %108 = sbr.rel (%p106) target = $region21
  $region20: #{mse_loss.1} parent=0 // pred_region
    %109 = vst [vmem:[%s4] sm:$0xff] 0.0
    %110 = vst [vmem:[%s4 + $0x8] sm:$0xff] 0.0
  $region21: #{mse_loss.1} parent=0 // pred_fallthru
    _
  %v111 = vld [vmem:[%s78] sm:$0xff]
  %v112 = vld [vmem:[%s78 + $0x8] sm:$0xff]
  %v113 = vld [vmem:[%s78 + $0x10] sm:$0xff]
  %v114 = vld [vmem:[%s78 + $0x18] sm:$0xff]
  %v115 = vld [vmem:[%s78 + $0x20] sm:$0xff]
  %v116 = vld [vmem:[%s78 + $0x28] sm:$0xff]
  %v117 = vld [vmem:[%s78 + $0x30] sm:$0xff]
  %v118 = vld [vmem:[%s78 + $0x38] sm:$0xff]
  %v119 = vld [vmem:[%s78 + $0x40] sm:$0xff]
  %v120 = vld [vmem:[%s78 + $0x48] sm:$0xff]
  %v121 = vld [vmem:[%s78 + $0x50] sm:$0xff]
  %v122 = vld [vmem:[%s78 + $0x58] sm:$0xff]
  %v123 = vld [vmem:[%s86] sm:$0xff]
  %v124 = vld [vmem:[%s86 + $0x8] sm:$0xff]
  %v125 = vld [vmem:[%s86 + $0x10] sm:$0xff]
  %v126 = vld [vmem:[%s86 + $0x18] sm:$0xff]
  %v127 = vld [vmem:[%s86 + $0x20] sm:$0xff]
  %v128 = vld [vmem:[%s86 + $0x28] sm:$0xff]
  %v129 = vld [vmem:[%s86 + $0x30] sm:$0xff]
  %v130 = vld [vmem:[%s86 + $0x38] sm:$0xff]
  %v131 = vld [vmem:[%s86 + $0x40] sm:$0xff]
  %v132 = vld [vmem:[%s86 + $0x48] sm:$0xff]
  %v133 = vld [vmem:[%s86 + $0x50] sm:$0xff]
  %v134 = vld [vmem:[%s86 + $0x58] sm:$0xff]
  %v135 = vsub.f32 %v111, %v123
  %v136 = vsub.f32 %v112, %v124
  %v137 = vsub.f32 %v113, %v125
  %v138 = vsub.f32 %v114, %v126
  %v139 = vsub.f32 %v115, %v127
  %v140 = vsub.f32 %v116, %v128
  %v141 = vsub.f32 %v117, %v129
  %v142 = vsub.f32 %v118, %v130
  %v143 = vsub.f32 %v119, %v131
  %v144 = vsub.f32 %v120, %v132
  %v145 = vsub.f32 %v121, %v133
  %v146 = vsub.f32 %v122, %v134
  %v147 = vld [vmem:[%s4] sm:$0xff]
  %v148 = vmul.f32 %v135, %v135
  %v149 = vmul.f32 %v136, %v136
  %v150 = vmul.f32 %v137, %v137
  %v151 = vmul.f32 %v138, %v138
  %v152 = vmul.f32 %v139, %v139
  %v153 = vmul.f32 %v140, %v140
  %v154 = vmul.f32 %v141, %v141
  %v155 = vmul.f32 %v142, %v142
  %v156 = vmul.f32 %v143, %v143
  %v157 = vmul.f32 %v144, %v144
  %v158 = vmul.f32 %v145, %v145
  %v159 = vmul.f32 %v146, %v146
  %v160 = vadd.f32 %v148, %v149
  %v161 = vadd.f32 %v160, %v150
  %v162 = vadd.f32 %v161, %v151
  %v163 = vadd.f32 %v162, %v152
  %v164 = vadd.f32 %v163, %v153
  %v165 = vadd.f32 %v164, %v154
  %v166 = vadd.f32 %v165, %v155
  %v167 = vadd.f32 %v166, %v156
  %v168 = vadd.f32 %v167, %v157
  %v169 = vadd.f32 %v168, %v158
  %v170 = vadd.f32 %v169, %v159
  %v171 = vadd.f32 %v147, %v170
  %172 = vst [vmem:[%s4] sm:$0xff] %v171
  %v173 = vld [vmem:[%s94] sm:$0xff]
  %v174 = vld [vmem:[%s94 + $0x8] sm:$0xff]
  %v175 = vld [vmem:[%s94 + $0x10] sm:$0xff]
  %v176 = vld [vmem:[%s94 + $0x18] sm:$0xff]
  %v177 = vld [vmem:[%s94 + $0x20] sm:$0xff]
  %v178 = vld [vmem:[%s94 + $0x28] sm:$0xff]
  %v179 = vld [vmem:[%s94 + $0x30] sm:$0xff]
  %v180 = vld [vmem:[%s94 + $0x38] sm:$0xff]
  %v181 = vld [vmem:[%s94 + $0x40] sm:$0xff]
  %v182 = vld [vmem:[%s94 + $0x48] sm:$0xff]
  %v183 = vld [vmem:[%s94 + $0x50] sm:$0xff]
  %v184 = vld [vmem:[%s94 + $0x58] sm:$0xff]
  %v185 = vld [vmem:[%s102] sm:$0xff]
  %v186 = vld [vmem:[%s102 + $0x8] sm:$0xff]
  %v187 = vld [vmem:[%s102 + $0x10] sm:$0xff]
  %v188 = vld [vmem:[%s102 + $0x18] sm:$0xff]
  %v189 = vld [vmem:[%s102 + $0x20] sm:$0xff]
  %v190 = vld [vmem:[%s102 + $0x28] sm:$0xff]
  %v191 = vld [vmem:[%s102 + $0x30] sm:$0xff]
  %v192 = vld [vmem:[%s102 + $0x38] sm:$0xff]
  %v193 = vld [vmem:[%s102 + $0x40] sm:$0xff]
  %v194 = vld [vmem:[%s102 + $0x48] sm:$0xff]
  %v195 = vld [vmem:[%s102 + $0x50] sm:$0xff]
  %v196 = vld [vmem:[%s102 + $0x58] sm:$0xff]
  %v197 = vsub.f32 %v173, %v185
  %v198 = vsub.f32 %v174, %v186
  %v199 = vsub.f32 %v175, %v187
  %v200 = vsub.f32 %v176, %v188
  %v201 = vsub.f32 %v177, %v189
  %v202 = vsub.f32 %v178, %v190
  %v203 = vsub.f32 %v179, %v191
  %v204 = vsub.f32 %v180, %v192
  %v205 = vsub.f32 %v181, %v193
  %v206 = vsub.f32 %v182, %v194
  %v207 = vsub.f32 %v183, %v195
  %v208 = vsub.f32 %v184, %v196
  %s209 = scalar_lea.vmem %s4, 8
  %v210 = vld [vmem:[%s209] sm:$0xff]
  %v211 = vmul.f32 %v197, %v197
  %v212 = vmul.f32 %v198, %v198
  %v213 = vmul.f32 %v199, %v199
  %v214 = vmul.f32 %v200, %v200
  %v215 = vmul.f32 %v201, %v201
  %v216 = vmul.f32 %v202, %v202
  %v217 = vmul.f32 %v203, %v203
  %v218 = vmul.f32 %v204, %v204
  %v219 = vmul.f32 %v205, %v205
  %v220 = vmul.f32 %v206, %v206
  %v221 = vmul.f32 %v207, %v207
  %v222 = vmul.f32 %v208, %v208
  %v223 = vadd.f32 %v211, %v212
  %v224 = vadd.f32 %v223, %v213
  %v225 = vadd.f32 %v224, %v214
  %v226 = vadd.f32 %v225, %v215
  %v227 = vadd.f32 %v226, %v216
  %v228 = vadd.f32 %v227, %v217
  %v229 = vadd.f32 %v228, %v218
  %v230 = vadd.f32 %v229, %v219
  %v231 = vadd.f32 %v230, %v220
  %v232 = vadd.f32 %v231, %v221
  %v233 = vadd.f32 %v232, %v222
  %v234 = vadd.f32 %v210, %v233
  %235 = vst [vmem:[%s209] sm:$0xff] %v234
  // Predicated region
  $region22: #{mse_loss.1} parent=0 // pred_check
    _
  $region23: #{mse_loss.1} parent=0 // pred_check_branch
    %237 = sbr.rel (0) target = $region25
  $region24: #{mse_loss.1} parent=0 // pred_region
    _
  $region25: #{mse_loss.1} parent=0 // pred_fallthru
    _
  // Predicated region
  $region26: #{mse_loss.1} parent=0 // pred_check
    _
  $region27: #{mse_loss.1} parent=0 // pred_check_branch
    %239 = sbr.rel (0) target = $region29
  $region28: #{mse_loss.1} parent=0 // pred_region
    _
  $region29: #{mse_loss.1} parent=0 // pred_fallthru
    _

</llo_original>
